<compile_context>
chip_gen: v5e
topology: v5e:2x2
jax: 0.10.0
libtpu: 0.0.40
codegen_flags: <defaults>
</compile_context>

<pallas_src>
import functools

import jax
import jax.numpy as jnp
from jax.experimental import pallas as pl
from jax.experimental.pallas import tpu as pltpu

_LANES = 128
_TARGET_TILE_ROWS = 4096     # 4096*128 px / grid step
_MIN_TILE_ROWS = 512         # keep per-channel writeback DMAs large / unmasked
_MIN_GRID_STEPS = 4          # let v7x shard the "parallel" axis over its 2 TCs
_VMEM_BUDGET = 16 << 20      # in + out, double-buffered; < 32 MiB scoped default


@functools.lru_cache(maxsize=None)
def _channel_shifts():
    """Byte position (shift) of channels 0..2 inside a packed RGBA int32 word.

    The probe runs on the same default (TPU) backend that executes the wrapper's
    bitcast_convert_type, so the byte order it observes is by construction the
    one the kernel sees (little-endian on all current XLA TPU backends).
    """
    probe = jax.lax.bitcast_convert_type(
        jnp.asarray([1, 2, 3, 4], dtype=jnp.uint8), jnp.int32)
    pv = int(probe)
    byte_of = {((pv >> s) & 0xFF) - 1: s for s in (0, 8, 16, 24)}
    return tuple(byte_of[c] for c in range(3))


def _make_kernel(shifts):
    def kernel(x_ref, o_ref):
        # x_ref: (tile_rows, lanes) int32   -- 4 packed uint8 channels per pixel
        # o_ref: (3, tile_rows, lanes) f32  -- one plane per output channel
        x = x_ref[...]
        for c, s in enumerate(shifts):            # statically unrolled, 3 iters
            v = x if s == 0 else (x >> s)         # VPU shift (sign bits masked below)
            o_ref[c] = (v & 0xFF).astype(jnp.float32)   # mask + exact s32->f32 cast
    return kernel


def _round_up(x, m):
    return -(-x // m) * m


def _pick_tile_rows(rows, lane_width):
    """Largest tile within the VMEM budget, aiming for >= _MIN_GRID_STEPS steps."""
    # 4 B in + 12 B out per pixel, double-buffered.
    budget_rows = _VMEM_BUDGET // (2 * 16 * lane_width)
    budget_rows = max(8, (budget_rows // 8) * 8)
    target = min(_TARGET_TILE_ROWS, budget_rows)
    floor = min(_MIN_TILE_ROWS, target)
    if rows <= floor:
        return rows                               # single full-extent block
    t = min(target, pl.cdiv(rows, _MIN_GRID_STEPS))
    t = max(t, floor)
    t = _round_up(t, 8)                           # sublane-aligned tiles
    return min(t, rows)


def _run(x2d):
    """x2d: (rows, lanes) int32 packed RGBA pixels -> (3, rows, lanes) float32."""
    rows, lanes = x2d.shape
    tile_rows = _pick_tile_rows(rows, lanes)
    grid = (pl.cdiv(rows, tile_rows),)            # ragged edge block is masked by Pallas
    return pl.pallas_call(
        _make_kernel(_channel_shifts()),
        out_shape=jax.ShapeDtypeStruct((3, rows, lanes), jnp.float32),
        grid=grid,
        in_specs=[pl.BlockSpec((tile_rows, lanes), lambda i: (i, 0))],
        out_specs=pl.BlockSpec((3, tile_rows, lanes), lambda i: (0, i, 0)),
        compiler_params=pltpu.CompilerParams(
            dimension_semantics=("parallel",),
        ),
    )(x2d)


def preprocess(raw: jax.Array) -> jax.Array:
    H, W, C = raw.shape
    assert C >= 3
    # TODO(synk): only uint8 HWC inputs (the packed-byte path) are supported here.
    assert raw.dtype == jnp.uint8

    # ---- wrapper-side layout plumbing (kept minimal; no full extra HBM passes
    # ---- around the kernel on the common paths) -----------------------------
    if C == 4:
        raw4 = raw
    elif C > 4:
        raw4 = raw[:, :, :4]
    else:
        # C == 3: interleave a dummy 4th byte so each pixel bitcasts to one i32.
        # TODO(synk): a 3-words-per-4-pixels kernel variant would avoid this copy.
        raw4 = jnp.pad(raw, ((0, 0), (0, 0), (0, 1)))
    packed = jax.lax.bitcast_convert_type(raw4, jnp.int32)        # (H, W) int32

    L = H * W
    if L % _LANES == 0:
        # Fast path: flatten the pixel axis into a lane-dense (rows, 128) slab.
        # No pads, no output slices -- the reshapes below are free.
        rows = L // _LANES
        out = _run(packed.reshape(rows, _LANES))                  # (3, rows, 128)
        return out.reshape(3, H, W)[None]

    # Ragged path: keep the native (H, W) layout (lane dim == full W is a legal
    # block without padding).  Stores may be lane-masked when W % 128 != 0, but
    # we avoid the flat-pad + output-slice extra HBM passes entirely.
    out = _run(packed)                                            # (3, H, W)
    return out[None]


if __name__ == "__main__":
    key = jax.random.PRNGKey(0)
    H, W, C = 16, 16, 4
    # synthetic "raw" image data, uint8 HWC (4th channel gets dropped)
    raw = jax.random.randint(key, (H, W, C), 0, 256, dtype=jnp.int32).astype(jnp.uint8)

    out = jax.block_until_ready(preprocess(raw))

    # pure-JAX reference of the PyTorch forward
    ref = jnp.transpose(raw[:, :, :3].astype(jnp.float32), (2, 0, 1))[None]

    assert out.shape == (1, 3, H, W), out.shape
    assert out.dtype == jnp.float32, out.dtype
    assert jnp.array_equal(out, ref), "mismatch vs reference"

    print("KERNEL_OK")
</pallas_src>

<mosaic_0001>
module attributes {stable_mosaic.version = 11 : i64} {
  func.func @kernel(%arg0: i32, %arg1: memref<2x128xi32, #tpu.memory_space<vmem>>, %arg2: memref<3x2x128xf32, #tpu.memory_space<vmem>>) attributes {dimension_semantics = [#tpu.dimension_semantics<parallel>], iteration_bounds = array<i64: 1>, scalar_prefetch = 0 : i64, scratch_operands = 0 : i64, tpu.core_type = #tpu.core_type<tc>, window_params = [{transform_indices = @transform_0, window_bounds = array<i64: 2, 128>}, {transform_indices = @transform_1, window_bounds = array<i64: 3, 2, 128>}]} {
    %c0 = arith.constant 0 : index
    %c0_0 = arith.constant 0 : index
    %0 = vector.load %arg1[%c0, %c0_0] : memref<2x128xi32, #tpu.memory_space<vmem>>, vector<2x128xi32>
    %c255_i32 = arith.constant 255 : i32
    %1 = vector.broadcast %c255_i32 : i32 to vector<2x128xi32>
    %2 = arith.andi %0, %1 : vector<2x128xi32>
    %3 = arith.sitofp %2 : vector<2x128xi32> to vector<2x128xf32>
    %c0_1 = arith.constant 0 : index
    %c0_2 = arith.constant 0 : index
    %c0_3 = arith.constant 0 : index
    %4 = vector.load %arg2[%c0_1, %c0_2, %c0_3] : memref<3x2x128xf32, #tpu.memory_space<vmem>>, vector<1x2x128xf32>
    %5 = vector.shape_cast %4 : vector<1x2x128xf32> to vector<2x128xf32>
    %6 = vector.shape_cast %3 : vector<2x128xf32> to vector<1x2x128xf32>
    tpu.vector_store %arg2[%c0_1, %c0_2, %c0_3], %6 {strides = array<i32>} : memref<3x2x128xf32, #tpu.memory_space<vmem>>, vector<1x2x128xf32>,
    %c8_i32 = arith.constant 8 : i32
    %7 = vector.broadcast %c8_i32 : i32 to vector<2x128xi32>
    %8 = arith.shrsi %0, %7 : vector<2x128xi32>
    %c255_i32_4 = arith.constant 255 : i32
    %9 = vector.broadcast %c255_i32_4 : i32 to vector<2x128xi32>
    %10 = arith.andi %8, %9 : vector<2x128xi32>
    %11 = arith.sitofp %10 : vector<2x128xi32> to vector<2x128xf32>
    %c1 = arith.constant 1 : index
    %c0_5 = arith.constant 0 : index
    %c0_6 = arith.constant 0 : index
    %12 = vector.load %arg2[%c1, %c0_5, %c0_6] : memref<3x2x128xf32, #tpu.memory_space<vmem>>, vector<1x2x128xf32>
    %13 = vector.shape_cast %12 : vector<1x2x128xf32> to vector<2x128xf32>
    %14 = vector.shape_cast %11 : vector<2x128xf32> to vector<1x2x128xf32>
    tpu.vector_store %arg2[%c1, %c0_5, %c0_6], %14 {strides = array<i32>} : memref<3x2x128xf32, #tpu.memory_space<vmem>>, vector<1x2x128xf32>,
    %c16_i32 = arith.constant 16 : i32
    %15 = vector.broadcast %c16_i32 : i32 to vector<2x128xi32>
    %16 = arith.shrsi %0, %15 : vector<2x128xi32>
    %c255_i32_7 = arith.constant 255 : i32
    %17 = vector.broadcast %c255_i32_7 : i32 to vector<2x128xi32>
    %18 = arith.andi %16, %17 : vector<2x128xi32>
    %19 = arith.sitofp %18 : vector<2x128xi32> to vector<2x128xf32>
    %c2 = arith.constant 2 : index
    %c0_8 = arith.constant 0 : index
    %c0_9 = arith.constant 0 : index
    %20 = vector.load %arg2[%c2, %c0_8, %c0_9] : memref<3x2x128xf32, #tpu.memory_space<vmem>>, vector<1x2x128xf32>
    %21 = vector.shape_cast %20 : vector<1x2x128xf32> to vector<2x128xf32>
    %22 = vector.shape_cast %19 : vector<2x128xf32> to vector<1x2x128xf32>
    tpu.vector_store %arg2[%c2, %c0_8, %c0_9], %22 {strides = array<i32>} : memref<3x2x128xf32, #tpu.memory_space<vmem>>, vector<1x2x128xf32>,
    return
  }
  func.func @transform_0(%arg0: i32) -> (i32, i32) {
    %c0_i32 = arith.constant 0 : i32
    %c0_i32_0 = arith.constant 0 : i32
    return %arg0, %c0_i32 : i32, i32
  }
  func.func @transform_1(%arg0: i32) -> (i32, i32, i32) {
    %c0_i32 = arith.constant 0 : i32
    %c0_i32_0 = arith.constant 0 : i32
    %c0_i32_1 = arith.constant 0 : i32
    return %c0_i32, %arg0, %c0_i32_0 : i32, i32, i32
  }
}

</mosaic_0001>

<llo_original>
// kernel: tpu_custom_call.1
$region0: #{tpu_custom_call.1}
  #allocation0 [shape = 'u32[]', space=smem, size = 0x4, offset = 0x4, fixed_abs, tag = 'smem constant byte address 0x4 - core index']
  #allocation1 [shape = 'u32[72,128]{1,0:T(1,128)}', space=vmem, size = 0x9000, scoped, tag = 'internal scratch']
  %s0 = inlined_call_operand.hbm [shape: s32[2,128], index: 0, kind: input, shape index: {}]
  %s1 = inlined_call_operand.hbm [shape: f32[3,2,128], index: 1, kind: output, shape index: {}]
  %s2 = sld [smem:[#allocation0]]
  $region18: #{tpu_custom_call.1} parent=0
    _
  %s4 = ssub.s32 1, %s2
  %s5 = scalar_select 0, %s4, %s2
  $region1: #{tpu_custom_call.1} parent=0
    #allocation2 [shape = 'u8[1024]{0}', space=vmem, size = 0x400, scoped, tag = 'input window, operand 0, single buffered']
    #allocation3 [shape = 's32[1]{0}', space=sflag, size = 0x4, scoped, tag = 'scoped memory for tpu_custom_call.1']
    #allocation4 [shape = 's32[1]{0}', space=sflag, size = 0x4, scoped, tag = 'scoped memory for tpu_custom_call.1']
    #allocation5 [shape = 'u8[3072]{0}', space=vmem, size = 0xc00, scoped, tag = 'output window, operand 0, single buffered']
    %6 = vsyncpa [#allocation3], 0
    %7 = vsyncpa [#allocation4], 0
    // Predicated region
    $region2: #{tpu_custom_call.1} parent=1 // pred_check
      _
    $region3: #{tpu_custom_call.1} parent=1 // pred_check_branch
      %9 = sbr.rel (0) target = $region5
    $region4: #{tpu_custom_call.1} parent=1 // pred_region
      %11 = vsyncadd [#allocation3], 0
      %s13 = sshll.u32 %s0, 4
      %s14 = int_to_ptr.hbm [resolvable:$true] %s13
      %s15 = sshll.u32 [#allocation2], 4
      %s16 = int_to_ptr.vmem [resolvable:$true] %s15
      %18 = dma.hbm_to_vmem [thread:$0]  %s14, 32, %s16, [#allocation3]
    $region5: #{tpu_custom_call.1} parent=1 // pred_fallthru
      _
    // Predicated region
    $region6: #{tpu_custom_call.1} parent=1 // pred_check
      _
    $region7: #{tpu_custom_call.1} parent=1 // pred_check_branch
      %20 = sbr.rel (0) target = $region9
    $region8: #{tpu_custom_call.1} parent=1 // pred_region
      %22 = dma.done [#allocation3], 32
    $region9: #{tpu_custom_call.1} parent=1 // pred_fallthru
      _
    %v23 = vld [vmem:[#allocation2] sm:$0x3]
    %v24 = vand.u32 %v23, 255
    %v25 = vcvt.s32.f32 %v24
    %26 = vst [vmem:[#allocation5] sm:$0x3] %v25
    %v27 = vshra.s32 %v23, 8
    %v28 = vand.u32 %v27, 255
    %v29 = vcvt.s32.f32 %v28
    %s30 = scalar_lea.vmem [#allocation5], 2
    %31 = vst [vmem:[%s30] sm:$0x3] %v29
    %v32 = vshra.s32 %v23, 16
    %v33 = vand.u32 %v32, 255
    %v34 = vcvt.s32.f32 %v33
    %s35 = scalar_lea.vmem [#allocation5], 4
    %36 = vst [vmem:[%s35] sm:$0x3] %v34
    // Predicated region
    $region10: #{tpu_custom_call.1} parent=1 // pred_check
      _
    $region11: #{tpu_custom_call.1} parent=1 // pred_check_branch
      %38 = sbr.rel (0) target = $region13
    $region12: #{tpu_custom_call.1} parent=1 // pred_region
      %40 = vsyncadd [#allocation4], 0
      %s41 = sshll.u32 [#allocation5], 4
      %s42 = int_to_ptr.vmem [resolvable:$true] %s41
      %s43 = sshll.u32 %s1, 4
      %s44 = int_to_ptr.hbm [resolvable:$true] %s43
      %49 = dma.vmem_to_hbm [thread:$0]  %s42, 96, %s44, [#allocation4], 32, 32, 2
    $region13: #{tpu_custom_call.1} parent=1 // pred_fallthru
      _
    // Predicated region
    $region14: #{tpu_custom_call.1} parent=1 // pred_check
      _
    $region15: #{tpu_custom_call.1} parent=1 // pred_check_branch
      %51 = sbr.rel (0) target = $region17
    $region16: #{tpu_custom_call.1} parent=1 // pred_region
      %53 = dma.done [#allocation4], 96
    $region17: #{tpu_custom_call.1} parent=1 // pred_fallthru
      _
    %54 = vsyncpa [#allocation3], 1
    %55 = vsyncpa [#allocation4], 1

</llo_original>
